<compile_context>
chip_gen: v7x
topology: tpu7x:2x2x1
jax: 0.10.0
libtpu: 0.0.40
codegen_flags: <defaults>
</compile_context>

<pallas_src>
import functools

import jax
import jax.numpy as jnp
import numpy as np
from jax.experimental import pallas as pl
from jax.experimental.pallas import tpu as pltpu

CRAZY_NEGATIVE_VALUE = -5000.0
B_AVG = (19 + 9) / 2          # 14.0
B_VARIANCE = 0.1


def _global_pool_kernel(*refs, is_value_head):
    if is_value_head:
        x_ref, c_ref, o_ref = refs
        m_ref = None
    else:
        x_ref, m_ref, c_ref, o_ref = refs

    # (tb, C, HW): reduction axis HW on lanes -> full vector width even for tiny C.
    x = x_ref[...].astype(jnp.float32)
    sum_x = jnp.sum(x, axis=-1)                       # (tb, C), VPU/XLU lane reduce

    c = c_ref[...]                                    # (tb, 1, 3) f32 coefficients
    coef0 = c[:, :, 0]                                # (tb, 1): 1/div
    coef1 = c[:, :, 1]                                # (tb, 1): (b_diff/10)/div

    layer0 = sum_x * coef0                            # mean
    layer1 = sum_x * coef1                            # mean * b_diff/10

    if is_value_head:
        coef2 = c[:, :, 2]                            # (b_diff^2/100 - b_var)/div
        layer2 = sum_x * coef2
    else:
        m = m_ref[...].astype(jnp.float32)            # (tb, 1, HW)
        raw = x + (1.0 - m) * CRAZY_NEGATIVE_VALUE    # masked-out -> huge negative
        layer2 = jnp.max(raw, axis=-1)                # (tb, C) masked max over HW

    # Output block is (tb, 3, C): every store starts at lane 0 (no lane-shifted
    # sub-128 slice stores).  Wrapper reshapes (B, 3, C) -> (B, 3C) for free.
    o_ref[:, 0, :] = layer0.astype(o_ref.dtype)
    o_ref[:, 1, :] = layer1.astype(o_ref.dtype)
    o_ref[:, 2, :] = layer2.astype(o_ref.dtype)


def _round_up(v, m):
    return -(-v // m) * m


def global_pool(x, mask_buffers, *, is_value_head=False, block_b=None):
    """Forward of GlobalPool. Returns (B, 3*C) pooled features (f32)."""
    mask, mask_sum_hw, mask_sum_hw_sqrt = mask_buffers
    B, C, H, W = x.shape
    HW = H * W

    # Free contiguous reshapes (no transposes, no extra HBM passes).
    x3 = x.reshape(B, C, HW)
    m3 = mask.reshape(B, 1, HW)

    div = mask_sum_hw.reshape(B, 1).astype(jnp.float32)
    div_sqrt = mask_sum_hw_sqrt.reshape(B, 1).astype(jnp.float32)
    b_diff = div_sqrt - B_AVG

    # Per-batch scalar math folded into one packed (B, 1, 3) coefficient array.
    coef0 = 1.0 / div
    coef1 = (b_diff / 10.0) / div
    coef2 = (jnp.square(b_diff) / 100.0 - B_VARIANCE) / div
    coefs = jnp.concatenate([coef0, coef1, coef2], axis=-1).reshape(B, 1, 3)

    # ---- Generation-aware VMEM budgeting ------------------------------------
    try:
        vmem_cap = int(getattr(pltpu.get_tpu_info(), "vmem_capacity_bytes",
                               64 * 1024 * 1024))
    except Exception:  # interpret mode / non-TPU fallback
        vmem_cap = 64 * 1024 * 1024  # v7x lower bound; safe on all generations
    # Few-MiB tiles already hit the HBM roofline; bigger only adds VMEM pressure.
    budget = min(vmem_cap // 4, 12 * 1024 * 1024)

    cpad = _round_up(C, 8)        # sublane padding of the (C, HW) tile in VMEM
    hwpad = _round_up(HW, 128)    # lane padding

    def footprint(tb):
        # Conservative (f32-sized) estimate of per-step scoped VMEM use.
        x_tile = tb * cpad * hwpad * 4
        m_tile = 0 if is_value_head else tb * 8 * hwpad * 4
        coef_tile = tb * 8 * 128 * 4
        out_tile = tb * 8 * 128 * 4
        dbuf_io = 2 * (x_tile + m_tile + coef_tile + out_tile)  # double-buffered
        temps = 2 * x_tile                                      # f32 upcast + `raw`
        return dbuf_io + temps

    if block_b is None:
        divisors = [d for d in range(1, B + 1) if B % d == 0]
        # Keep >= 2 grid steps whenever B allows it (v7x megacore + pipelining).
        multi = [d for d in divisors if B // d >= 2] or [1]
        fitting = [d for d in multi if footprint(d) <= budget] or [1]
        even = [d for d in fitting if (B // d) % 2 == 0]
        block_b = max(even) if even else max(fitting)
    assert B % block_b == 0
    grid = (B // block_b,)

    fp = footprint(block_b)
    # Explicit limit (v5e default is only 16 MiB); modest but always >= footprint.
    vmem_limit = int(max(fp + (4 << 20), min(vmem_cap // 2, 32 << 20)))

    # block_b is a leading (non-tiled) dim on every operand -> (8,128) rule is
    # satisfied by full trailing dims, so block_b can be any divisor of B.
    x_spec = pl.BlockSpec((block_b, C, HW), lambda i: (i, 0, 0))
    m_spec = pl.BlockSpec((block_b, 1, HW), lambda i: (i, 0, 0))
    c_spec = pl.BlockSpec((block_b, 1, 3), lambda i: (i, 0, 0))
    out_spec = pl.BlockSpec((block_b, 3, C), lambda i: (i, 0, 0))

    if is_value_head:
        in_specs = [x_spec, c_spec]
        args = (x3, coefs)
    else:
        in_specs = [x_spec, m_spec, c_spec]
        args = (x3, m3, coefs)

    kernel = functools.partial(_global_pool_kernel, is_value_head=is_value_head)

    out = pl.pallas_call(
        kernel,
        out_shape=jax.ShapeDtypeStruct((B, 3, C), jnp.float32),
        grid_spec=pltpu.PrefetchScalarGridSpec(
            num_scalar_prefetch=0, grid=grid,
            in_specs=in_specs, out_specs=out_spec),
        compiler_params=pltpu.CompilerParams(
            dimension_semantics=("parallel",),
            vmem_limit_bytes=vmem_limit),
    )(*args)

    # (B, 3, C) -> (B, 3C): contiguous, matches torch.cat((l0, l1, l2), dim=1).
    return out.reshape(B, 3 * C)


def _reference(x, mask_buffers, is_value_head):
    mask, mask_sum_hw, mask_sum_hw_sqrt = mask_buffers
    b, c, h, w = x.shape
    div = mask_sum_hw.reshape(-1, 1)
    div_sqrt = mask_sum_hw_sqrt.reshape(-1, 1)
    layer_raw_mean = jnp.sum(x, axis=(2, 3)) / div
    b_diff = div_sqrt - B_AVG
    layer0 = layer_raw_mean
    layer1 = layer_raw_mean * (b_diff / 10.0)
    if is_value_head:
        layer2 = layer_raw_mean * (jnp.square(b_diff) / 100.0 - B_VARIANCE)
    else:
        raw_x = x + (1.0 - mask) * CRAZY_NEGATIVE_VALUE
        layer2 = jnp.max(raw_x.reshape(b, c, h * w), axis=2)
    return jnp.concatenate([layer0, layer1, layer2], axis=1)


if __name__ == "__main__":
    key = jax.random.PRNGKey(0)
    kx, km = jax.random.split(key, 2)

    N, C, H, W = 2, 4, 16, 16
    x = jax.random.normal(kx, (N, C, H, W), jnp.float32)
    mask = (jax.random.uniform(km, (N, 1, H, W)) > 0.2).astype(jnp.float32)
    mask_sum_hw = jnp.sum(mask, axis=(1, 2, 3))          # (N,)
    mask_sum_hw_sqrt = jnp.sqrt(mask_sum_hw)
    mask_buffers = (mask, mask_sum_hw, mask_sum_hw_sqrt)

    for is_value_head in (False, True):
        out = global_pool(x, mask_buffers, is_value_head=is_value_head)
        jax.block_until_ready(out)
        ref = _reference(x, mask_buffers, is_value_head)
        np.testing.assert_allclose(np.asarray(out), np.asarray(ref),
                                   rtol=1e-4, atol=1e-4)

    print("KERNEL_OK")
</pallas_src>

<mosaic_0001>
module attributes {stable_mosaic.version = 11 : i64} {
  func.func @_global_pool_kernel(%arg0: i32, %arg1: memref<1x4x256xf32, #tpu.memory_space<vmem>>, %arg2: memref<1x1x256xf32, #tpu.memory_space<vmem>>, %arg3: memref<1x1x3xf32, #tpu.memory_space<vmem>>, %arg4: memref<1x3x4xf32, #tpu.memory_space<vmem>>) attributes {dimension_semantics = [#tpu.dimension_semantics<parallel>], iteration_bounds = array<i64: 2>, scalar_prefetch = 0 : i64, scratch_operands = 0 : i64, tpu.core_type = #tpu.core_type<tc>, window_params = [{transform_indices = @transform_0, window_bounds = array<i64: 1, 4, 256>}, {transform_indices = @transform_1, window_bounds = array<i64: 1, 1, 256>}, {transform_indices = @transform_2, window_bounds = array<i64: 1, 1, 3>}, {transform_indices = @transform_3, window_bounds = array<i64: 1, 3, 4>}]} {
    %c0 = arith.constant 0 : index
    %c0_0 = arith.constant 0 : index
    %c0_1 = arith.constant 0 : index
    %0 = vector.load %arg1[%c0, %c0_0, %c0_1] : memref<1x4x256xf32, #tpu.memory_space<vmem>>, vector<1x4x256xf32>
    %cst = arith.constant dense<0.000000e+00> : vector<1x4xf32>
    %1 = vector.multi_reduction <add>, %0, %cst [2] : vector<1x4x256xf32> to vector<1x4xf32>
    %c0_2 = arith.constant 0 : index
    %c0_3 = arith.constant 0 : index
    %c0_4 = arith.constant 0 : index
    %2 = vector.load %arg3[%c0_2, %c0_3, %c0_4] : memref<1x1x3xf32, #tpu.memory_space<vmem>>, vector<1x1x3xf32>
    %3 = vector.extract_strided_slice %2 {offsets = [0, 0, 0], sizes = [1, 1, 1], strides = [1, 1, 1]} : vector<1x1x3xf32> to vector<1x1x1xf32>
    %4 = vector.shape_cast %3 : vector<1x1x1xf32> to vector<1x1xf32>
    %5 = vector.extract_strided_slice %2 {offsets = [0, 0, 1], sizes = [1, 1, 1], strides = [1, 1, 1]} : vector<1x1x3xf32> to vector<1x1x1xf32>
    %6 = vector.shape_cast %5 : vector<1x1x1xf32> to vector<1x1xf32>
    %7 = vector.broadcast %4 : vector<1x1xf32> to vector<1x4xf32>
    %8 = arith.mulf %1, %7 : vector<1x4xf32>
    %9 = vector.broadcast %6 : vector<1x1xf32> to vector<1x4xf32>
    %10 = arith.mulf %1, %9 : vector<1x4xf32>
    %c0_5 = arith.constant 0 : index
    %c0_6 = arith.constant 0 : index
    %c0_7 = arith.constant 0 : index
    %11 = vector.load %arg2[%c0_5, %c0_6, %c0_7] : memref<1x1x256xf32, #tpu.memory_space<vmem>>, vector<1x1x256xf32>
    %cst_8 = arith.constant 1.000000e+00 : f32
    %12 = vector.broadcast %cst_8 : f32 to vector<1x1x256xf32>
    %13 = arith.subf %12, %11 : vector<1x1x256xf32>
    %cst_9 = arith.constant -5.000000e+03 : f32
    %14 = vector.broadcast %cst_9 : f32 to vector<1x1x256xf32>
    %15 = arith.mulf %13, %14 : vector<1x1x256xf32>
    %16 = vector.broadcast %15 : vector<1x1x256xf32> to vector<1x4x256xf32>
    %17 = arith.addf %0, %16 : vector<1x4x256xf32>
    %cst_10 = arith.constant dense<0xFF800000> : vector<1x4xf32>
    %18 = vector.multi_reduction <maximumf>, %17, %cst_10 [2] : vector<1x4x256xf32> to vector<1x4xf32>
    %c0_11 = arith.constant 0 : index
    %c0_12 = arith.constant 0 : index
    %c0_13 = arith.constant 0 : index
    %19 = vector.load %arg4[%c0_11, %c0_12, %c0_13] : memref<1x3x4xf32, #tpu.memory_space<vmem>>, vector<1x1x4xf32>
    %20 = vector.shape_cast %19 : vector<1x1x4xf32> to vector<1x4xf32>
    %21 = vector.shape_cast %8 : vector<1x4xf32> to vector<1x1x4xf32>
    tpu.vector_store %arg4[%c0_11, %c0_12, %c0_13], %21 {strides = array<i32>} : memref<1x3x4xf32, #tpu.memory_space<vmem>>, vector<1x1x4xf32>,
    %c0_14 = arith.constant 0 : index
    %c1 = arith.constant 1 : index
    %c0_15 = arith.constant 0 : index
    %22 = vector.load %arg4[%c0_14, %c1, %c0_15] : memref<1x3x4xf32, #tpu.memory_space<vmem>>, vector<1x1x4xf32>
    %23 = vector.shape_cast %22 : vector<1x1x4xf32> to vector<1x4xf32>
    %24 = vector.shape_cast %10 : vector<1x4xf32> to vector<1x1x4xf32>
    tpu.vector_store %arg4[%c0_14, %c1, %c0_15], %24 {strides = array<i32>} : memref<1x3x4xf32, #tpu.memory_space<vmem>>, vector<1x1x4xf32>,
    %c0_16 = arith.constant 0 : index
    %c2 = arith.constant 2 : index
    %c0_17 = arith.constant 0 : index
    %25 = vector.load %arg4[%c0_16, %c2, %c0_17] : memref<1x3x4xf32, #tpu.memory_space<vmem>>, vector<1x1x4xf32>
    %26 = vector.shape_cast %25 : vector<1x1x4xf32> to vector<1x4xf32>
    %27 = vector.shape_cast %18 : vector<1x4xf32> to vector<1x1x4xf32>
    tpu.vector_store %arg4[%c0_16, %c2, %c0_17], %27 {strides = array<i32>} : memref<1x3x4xf32, #tpu.memory_space<vmem>>, vector<1x1x4xf32>,
    return
  }
  func.func @transform_0(%arg0: i32) -> (i32, i32, i32) {
    %c0_i32 = arith.constant 0 : i32
    %c0_i32_0 = arith.constant 0 : i32
    %c0_i32_1 = arith.constant 0 : i32
    return %arg0, %c0_i32, %c0_i32_0 : i32, i32, i32
  }
  func.func @transform_1(%arg0: i32) -> (i32, i32, i32) {
    %c0_i32 = arith.constant 0 : i32
    %c0_i32_0 = arith.constant 0 : i32
    %c0_i32_1 = arith.constant 0 : i32
    return %arg0, %c0_i32, %c0_i32_0 : i32, i32, i32
  }
  func.func @transform_2(%arg0: i32) -> (i32, i32, i32) {
    %c0_i32 = arith.constant 0 : i32
    %c0_i32_0 = arith.constant 0 : i32
    %c0_i32_1 = arith.constant 0 : i32
    return %arg0, %c0_i32, %c0_i32_0 : i32, i32, i32
  }
  func.func @transform_3(%arg0: i32) -> (i32, i32, i32) {
    %c0_i32 = arith.constant 0 : i32
    %c0_i32_0 = arith.constant 0 : i32
    %c0_i32_1 = arith.constant 0 : i32
    return %arg0, %c0_i32, %c0_i32_0 : i32, i32, i32
  }
}

</mosaic_0001>

<llo_original>
// kernel: tpu_custom_call.1
$region0: #{tpu_custom_call.1}
  #allocation0 [shape = 'u32[]', space=smem, size = 0x4, offset = 0x4, fixed_abs, tag = 'smem constant byte address 0x4 - core index']
  #allocation1 [shape = 'u32[144,128]{1,0:T(1,128)}', space=vmem, size = 0x12000, scoped, tag = 'internal scratch']
  %s0 = inlined_call_operand.hbm [shape: f32[2,4,256], index: 0, kind: input, shape index: {}]
  %s1 = inlined_call_operand.hbm [shape: f32[2,1,256], index: 1, kind: input, shape index: {}]
  %s2 = inlined_call_operand.vmem [shape: f32[2,1,3], index: 2, kind: input, shape index: {}]
  %s3 = inlined_call_operand.vmem [shape: f32[2,3,4], index: 3, kind: output, shape index: {}]
  %s4 = sld [smem:[#allocation0]]
  $region53: #{tpu_custom_call.1} parent=0
    _
  %s6 = ssub.s32 1, %s4
  %s7 = scalar_select 0, %s6, %s4
  $region1: #{tpu_custom_call.1} parent=0
    #allocation2 [shape = 'u8[8192]{0}', space=vmem, size = 0x2000, scoped, tag = 'input window, operand 0']
    #allocation3 [shape = 's32[2]{0}', space=sflag, size = 0x8, scoped, tag = 'scoped memory for tpu_custom_call.1']
    #allocation4 [shape = 'u8[2048]{0}', space=vmem, size = 0x800, scoped, tag = 'input window, operand 1']
    #allocation5 [shape = 's32[2]{0}', space=sflag, size = 0x8, scoped, tag = 'scoped memory for tpu_custom_call.1']
    %8 = vsyncpa [#allocation3], 0
    %s9 = scalar_lea.sflag [#allocation3], 1
    %10 = vsyncpa %s9, 0
    %11 = vsyncpa [#allocation5], 0
    %s12 = scalar_lea.sflag [#allocation5], 1
    %13 = vsyncpa %s12, 0
    loop: start=0, step=1, limit=4
    $region2: #{tpu_custom_call.1} parent=1 // loop_pre_header
      _
    $region3: #{tpu_custom_call.1} parent=1 // loop_header
      %s15 = sphi 0, %s19
      %p16 = scmp.ge.s32.totalorder %s15, 4
      %s25 = sphi 0, %s27
      %s28 = sphi 0, %s25
      %s29 = sphi 0, %s28
      %s45 = sphi 0, %s29
      %s51 = sphi 0, %s53
      %s54 = sphi 0, %s51
      %s55 = sphi 0, %s54
      %s71 = sphi 0, %s55
      %s77 = sphi 0, %s79
      %s80 = sphi 0, %s77
      %s81 = sphi 0, %s80
      %s97 = sphi 0, %s81
      %s103 = sphi 0, %s105
      %s106 = sphi 0, %s103
      %s107 = sphi 0, %s106
      %s123 = sphi 0, %s107
    $region4: #{tpu_custom_call.1} parent=1 // loop_header_branch
      %18 = sbr.rel (%p16) target = $region8
    $region5: #{tpu_custom_call.1} parent=1 // loop_body
      %s20 = ssub.s32 %s15, 1
      %s21 = ssub.s32 %s15, 2
      %s22 = sadd.s32 %s15, 1
      %s23 = ssub.s32 %s15, %s22
      %p24 = scmp.eq.s32.totalorder %s23, 0
      %s26 = sadd.s32 %s25, 1
      %s27 = scalar_select %p24, %s25, %s26
      %p30 = pneg %p24
      %p31 = scmp.eq.s32.totalorder %s15, 1
      %p32 = por %p30, %p31
      %p33 = scmp.ne.s32.totalorder %s25, %s28
      %p34 = scmp.eq.s32.totalorder %s15, 0
      %p35 = por %p33, %p34
      %p36 = scmp.ne.s32.totalorder %s25, %s28
      %p37 = scmp.eq.s32.totalorder %s20, 1
      %p38 = por %p36, %p37
      %p39 = scmp.ne.s32.totalorder %s28, %s29
      %p40 = scmp.eq.s32.totalorder %s20, 0
      %p41 = por %p39, %p40
      %p42 = scmp.ne.s32.totalorder %s28, %s29
      %p43 = scmp.eq.s32.totalorder %s21, 1
      %p44 = por %p42, %p43
      %p46 = scmp.ne.s32.totalorder %s29, %s45
      %p47 = scmp.eq.s32.totalorder %s21, 0
      %p48 = por %p46, %p47
      %s49 = ssub.s32 %s15, %s22
      %p50 = scmp.eq.s32.totalorder %s49, 0
      %s52 = sadd.s32 %s51, 1
      %s53 = scalar_select %p50, %s51, %s52
      %p56 = pneg %p50
      %p57 = scmp.eq.s32.totalorder %s15, 1
      %p58 = por %p56, %p57
      %p59 = scmp.ne.s32.totalorder %s51, %s54
      %p60 = scmp.eq.s32.totalorder %s15, 0
      %p61 = por %p59, %p60
      %p62 = scmp.ne.s32.totalorder %s51, %s54
      %p63 = scmp.eq.s32.totalorder %s20, 1
      %p64 = por %p62, %p63
      %p65 = scmp.ne.s32.totalorder %s54, %s55
      %p66 = scmp.eq.s32.totalorder %s20, 0
      %p67 = por %p65, %p66
      %p68 = scmp.ne.s32.totalorder %s54, %s55
      %p69 = scmp.eq.s32.totalorder %s21, 1
      %p70 = por %p68, %p69
      %p72 = scmp.ne.s32.totalorder %s55, %s71
      %p73 = scmp.eq.s32.totalorder %s21, 0
      %p74 = por %p72, %p73
      %s75 = ssub.s32 %s15, %s22
      %p76 = scmp.eq.s32.totalorder %s75, 0
      %s78 = sadd.s32 %s77, 1
      %s79 = scalar_select %p76, %s77, %s78
      %p82 = pneg %p76
      %p83 = scmp.eq.s32.totalorder %s15, 1
      %p84 = por %p82, %p83
      %p85 = scmp.ne.s32.totalorder %s77, %s80
      %p86 = scmp.eq.s32.totalorder %s15, 0
      %p87 = por %p85, %p86
      %p88 = scmp.ne.s32.totalorder %s77, %s80
      %p89 = scmp.eq.s32.totalorder %s20, 1
      %p90 = por %p88, %p89
      %p91 = scmp.ne.s32.totalorder %s80, %s81
      %p92 = scmp.eq.s32.totalorder %s20, 0
      %p93 = por %p91, %p92
      %p94 = scmp.ne.s32.totalorder %s80, %s81
      %p95 = scmp.eq.s32.totalorder %s21, 1
      %p96 = por %p94, %p95
      %p98 = scmp.ne.s32.totalorder %s81, %s97
      %p99 = scmp.eq.s32.totalorder %s21, 0
      %p100 = por %p98, %p99
      %s101 = ssub.s32 %s15, %s22
      %p102 = scmp.eq.s32.totalorder %s101, 0
      %s104 = sadd.s32 %s103, 1
      %s105 = scalar_select %p102, %s103, %s104
      %p108 = pneg %p102
      %p109 = scmp.eq.s32.totalorder %s15, 1
      %p110 = por %p108, %p109
      %p111 = scmp.ne.s32.totalorder %s103, %s106
      %p112 = scmp.eq.s32.totalorder %s15, 0
      %p113 = por %p111, %p112
      %p114 = scmp.ne.s32.totalorder %s103, %s106
      %p115 = scmp.eq.s32.totalorder %s20, 1
      %p116 = por %p114, %p115
      %p117 = scmp.ne.s32.totalorder %s106, %s107
      %p118 = scmp.eq.s32.totalorder %s20, 0
      %p119 = por %p117, %p118
      %p120 = scmp.ne.s32.totalorder %s106, %s107
      %p121 = scmp.eq.s32.totalorder %s21, 1
      %p122 = por %p120, %p121
      %p124 = scmp.ne.s32.totalorder %s107, %s123
      %p125 = scmp.eq.s32.totalorder %s21, 0
      %p126 = por %p124, %p125
      %p127 = scmp.le.s32.totalorder 1, %s15
      %p128 = scmp.lt.s32.totalorder %s15, 3
      %p129 = pnand %p127, %p128
      %p130 = pneg %p129
      // Predicated region
      $region9: #{tpu_custom_call.1} parent=5 // pred_check
        _
      $region10: #{tpu_custom_call.1} parent=5 // pred_check_branch
        %132 = sbr.rel (%p129) target = $region12
      $region11: #{tpu_custom_call.1} parent=5 // pred_region
        %s133 = ssub.s32 %s15, 1
      $region12: #{tpu_custom_call.1} parent=5 // pred_fallthru
        _
      %p134 = scmp.lt.s32.totalorder %s15, 2
      // Predicated region
      $region13: #{tpu_custom_call.1} parent=5 // pred_check
        %p135 = pneg %p134
      $region14: #{tpu_custom_call.1} parent=5 // pred_check_branch
        %137 = sbr.rel (%p135) target = $region16
      $region15: #{tpu_custom_call.1} parent=5 // pred_region
        // Predicated region
        $region17: #{tpu_custom_call.1} parent=15 // pred_check
          %p138 = pneg %p35
        $region18: #{tpu_custom_call.1} parent=15 // pred_check_branch
          %140 = sbr.rel (%p138) target = $region20
        $region19: #{tpu_custom_call.1} parent=15 // pred_region
          %s141 = sand.u32 %s25, 1
          %s142 = scalar_lea.sflag [#allocation3], %s141
          %s143 = sand.u32 %s25, 1
          %s144 = smul.addr %s143, 8
          %s145 = scalar_lea.vmem [#allocation2], %s144
          %s147 = ssub.s32 128, 128
          %148 = vsyncadd %s142, %s147
          %s149 = smul.addr %s15, 2
          %s150 = smul.addr %s149, 64
          %s151 = scalar_lea.hbm %s0, %s150
          %s153 = sshll.u32 %s145, 4
          %s154 = int_to_ptr.vmem [resolvable:$true] %s153
          %156 = dma.hbm_to_vmem [thread:$0]  %s151, 128, %s154, %s142
        $region20: #{tpu_custom_call.1} parent=15 // pred_fallthru
          _
        // Predicated region
        $region21: #{tpu_custom_call.1} parent=15 // pred_check
          %p157 = pneg %p61
        $region22: #{tpu_custom_call.1} parent=15 // pred_check_branch
          %159 = sbr.rel (%p157) target = $region24
        $region23: #{tpu_custom_call.1} parent=15 // pred_region
          %s160 = sand.u32 %s51, 1
          %s161 = scalar_lea.sflag [#allocation5], %s160
          %s162 = sand.u32 %s51, 1
          %s163 = smul.addr %s162, 2
          %s164 = scalar_lea.vmem [#allocation4], %s163
          %s166 = ssub.s32 32, 32
          %167 = vsyncadd %s161, %s166
          %s168 = smul.addr %s15, 2
          %s169 = smul.addr %s168, 16
          %s170 = scalar_lea.hbm %s1, %s169
          %s172 = sshll.u32 %s164, 4
          %s173 = int_to_ptr.vmem [resolvable:$true] %s172
          %175 = dma.hbm_to_vmem [thread:$0]  %s170, 32, %s173, %s161
        $region24: #{tpu_custom_call.1} parent=15 // pred_fallthru
          _
        // Predicated region
        $region25: #{tpu_custom_call.1} parent=15 // pred_check
          %p176 = pneg %p87
        $region26: #{tpu_custom_call.1} parent=15 // pred_check_branch
          %178 = sbr.rel (%p176) target = $region28
        $region27: #{tpu_custom_call.1} parent=15 // pred_region
          %p179 = scmp.lt.s32.totalorder %s15, 1
          %s180 = scalar_select %p179, %s15, 1
          %s181 = scalar_lea.vmem %s2, %s180
        $region28: #{tpu_custom_call.1} parent=15 // pred_fallthru
          _
      $region16: #{tpu_custom_call.1} parent=5 // pred_fallthru
        _
      %p182 = scmp.le.s32.totalorder 1, %s15
      %p183 = scmp.lt.s32.totalorder %s15, 3
      %p184 = pnand %p182, %p183
      %p185 = pneg %p184
      // Predicated region
      $region29: #{tpu_custom_call.1} parent=5 // pred_check
        _
      $region30: #{tpu_custom_call.1} parent=5 // pred_check_branch
        %187 = sbr.rel (%p184) target = $region32
      $region31: #{tpu_custom_call.1} parent=5 // pred_region
        %s188 = ssub.s32 %s15, 1
        %s189 = sand.u32 %s28, 1
        %s190 = scalar_lea.sflag [#allocation3], %s189
        %s191 = sand.u32 %s28, 1
        %s192 = smul.addr %s191, 8
        %s193 = scalar_lea.vmem [#allocation2], %s192
        // Predicated region
        $region33: #{tpu_custom_call.1} parent=31 // pred_check
          %p194 = pneg %p41
        $region34: #{tpu_custom_call.1} parent=31 // pred_check_branch
          %196 = sbr.rel (%p194) target = $region36
        $region35: #{tpu_custom_call.1} parent=31 // pred_region
          %197 = dma.done %s190, 128
        $region36: #{tpu_custom_call.1} parent=31 // pred_fallthru
          _
        %s198 = sand.u32 %s54, 1
        %s199 = scalar_lea.sflag [#allocation5], %s198
        %s200 = sand.u32 %s54, 1
        %s201 = smul.addr %s200, 2
        %s202 = scalar_lea.vmem [#allocation4], %s201
        // Predicated region
        $region37: #{tpu_custom_call.1} parent=31 // pred_check
          %p203 = pneg %p67
        $region38: #{tpu_custom_call.1} parent=31 // pred_check_branch
          %205 = sbr.rel (%p203) target = $region40
        $region39: #{tpu_custom_call.1} parent=31 // pred_region
          %206 = dma.done %s199, 32
        $region40: #{tpu_custom_call.1} parent=31 // pred_fallthru
          _
        %s207 = sand.u32 %s28, 1
        %s208 = scalar_lea.sflag [#allocation3], %s207
        %s209 = sand.u32 %s28, 1
        %s210 = smul.addr %s209, 8
        %s211 = scalar_lea.vmem [#allocation2], %s210
        %p212 = pneg %p41
        %p213 = pneg %p38
        %s214 = sand.u32 %s54, 1
        %s215 = scalar_lea.sflag [#allocation5], %s214
        %s216 = sand.u32 %s54, 1
        %s217 = smul.addr %s216, 2
        %s218 = scalar_lea.vmem [#allocation4], %s217
        %p219 = pneg %p67
        %p220 = pneg %p64
        %p221 = scmp.lt.s32.totalorder %s20, 1
        %s222 = scalar_select %p221, %s20, 1
        %s223 = scalar_lea.vmem %s2, %s222
        %p224 = pneg %p93
        %p225 = pneg %p90
        %p226 = pneg %p119
        %p227 = pneg %p116
        %p228 = scmp.lt.s32.totalorder %s20, 1
        %s229 = scalar_select %p228, %s20, 1
        %s230 = smul.addr %s229, 4
        %s231 = scalar_lea.vmem %s3, %s230
        %p232 = scmp.lt.s32.totalorder %s20, 1
        %s233 = scalar_select %p232, %s20, 1
        %s234 = scalar_lea.vmem %s2, %s233
        %p235 = scmp.lt.s32.totalorder %s20, 1
        %s236 = scalar_select %p235, %s20, 1
        %s237 = smul.addr %s236, 4
        %s238 = scalar_lea.vmem %s3, %s237
        %v239 = vld [vmem:[%s193] sm:$0xff]
        %v241 = vcombine.high %v239, %v239
        %vm243 = vcmask 1043456
        %v244 = vsel %vm243, %v239, 0.0
        %v245 = vsel %vm243, %v241, 0.0
        %v246 = vadd.f32 %v244, %v245
        %247 = vadd.xlane.f32.xlu0 %v246
        %v248 = vpop.xlane.xlu0 %247
        %v249 = vld [vmem:[%s234] sm:$0x1]
        %251 = vset.pattern.permute.xlu0 0
        %252 = vperm.xlu0 %251, %v249
        %v253 = vpop.permute.xlu0 %252
        %v255 = vlaneseq
        %v256 = vshrl.u32 %v255, 7
        %v257 = vsub.s32 0, %v256
        %v258 = vrot.slane %v253, %v257
        %v259 = vmul.f32 %v248, %v258
        %260 = vset.pattern.permute.xlu0 1
        %261 = vperm.xlu0 %260, %v249
        %v262 = vpop.permute.xlu0 %261
        %v264 = vlaneseq
        %v265 = vshrl.u32 %v264, 7
        %v266 = vsub.s32 0, %v265
        %v267 = vrot.slane %v262, %v266
        %v268 = vmul.f32 %v248, %v267
        %v269 = vld [vmem:[%s202] sm:$0x3]
        %v270 = vsub.f32 1.0, %v269
        %v271 = vmul.f32 %v270, -5000.0
        %v273 = vlaneseq
        %v274 = vshrl.u32 %v273, 7
        %v275 = vsub.s32 0, %v274
        %v276 = vrot.slane %v271, %v275
        %v277 = vlaneseq
        %v278 = vshrl.u32 %v277, 7
        %v279 = vsub.s32 1, %v278
        %v280 = vrot.slane %v271, %v279
        %v281 = vcombine.low %v276, %v280
        %v283 = vadd.f32 %v239, %v281
        %v285 = vcombine.high %v283, %v283
        %v287 = vsel %vm243, %v283, -inf
        %v288 = vsel %vm243, %v285, -inf
        %v289 = vmax.f32 %v287, %v288
        %290 = vmax.xlane.f32.xlu0 %v289
        %v291 = vpop.xlane.xlu0 %290
        %v293 = vlaneseq
        %v294 = vand.u32 %v293, 127
        %v295 = vlaneseq
        %v296 = vshrl.u32 %v295, 7
        %v297 = vsub.s32 %v294, %v296
        %v298 = vrot.slane %v259, %v297
        %vm300 = vcmask 24576
        %301 = vst.msk [vmem:[%s238] sm:$0x1] %vm300, %v298
        %v303 = vlaneseq
        %v304 = vshrl.u32 %v303, 7
        %v305 = vsub.s32 %v294, %v304
        %v306 = vrot.slane %v268, %v305
        %308 = vst.msk [vmem:[%s238 + $0x1] sm:$0x1] %vm300, %v306
        %v310 = vlaneseq
        %v311 = vshrl.u32 %v310, 7
        %v312 = vsub.s32 %v294, %v311
        %v313 = vrot.slane %v291, %v312
        %315 = vst.msk [vmem:[%s238 + $0x2] sm:$0x1] %vm300, %v313
        %p316 = scmp.lt.s32.totalorder %s20, 1
        %s317 = scalar_select %p316, %s20, 1
        %s318 = smul.addr %s317, 4
        %s319 = scalar_lea.vmem %s3, %s318
        // Predicated region
        $region41: #{tpu_custom_call.1} parent=31 // pred_check
          %p320 = pneg %p116
        $region42: #{tpu_custom_call.1} parent=31 // pred_check_branch
          %322 = sbr.rel (%p320) target = $region44
        $region43: #{tpu_custom_call.1} parent=31 // pred_region
          _
        $region44: #{tpu_custom_call.1} parent=31 // pred_fallthru
          _
      $region32: #{tpu_custom_call.1} parent=5 // pred_fallthru
        _
      %p323 = scmp.le.s32.totalorder 2, %s15
      // Predicated region
      $region45: #{tpu_custom_call.1} parent=5 // pred_check
        %p324 = pneg %p323
      $region46: #{tpu_custom_call.1} parent=5 // pred_check_branch
        %326 = sbr.rel (%p324) target = $region48
      $region47: #{tpu_custom_call.1} parent=5 // pred_region
        %s327 = ssub.s32 %s15, 2
        // Predicated region
        $region49: #{tpu_custom_call.1} parent=47 // pred_check
          %p328 = pneg %p122
        $region50: #{tpu_custom_call.1} parent=47 // pred_check_branch
          %330 = sbr.rel (%p328) target = $region52
        $region51: #{tpu_custom_call.1} parent=47 // pred_region
          %p331 = scmp.lt.s32.totalorder %s21, 1
          %s332 = scalar_select %p331, %s21, 1
          %s333 = smul.addr %s332, 4
          %s334 = scalar_lea.vmem %s3, %s333
        $region52: #{tpu_custom_call.1} parent=47 // pred_fallthru
          _
      $region48: #{tpu_custom_call.1} parent=5 // pred_fallthru
        _
    $region6: #{tpu_custom_call.1} parent=1 // loop_footer
      %s19 = sadd.s32 1, %s15
    $region7: #{tpu_custom_call.1} parent=1 // loop_footer_branch
      %14 = sbr.rel target = $region3
    $region8: #{tpu_custom_call.1} parent=1 // loop_exit
      _
    %335 = vsyncpa [#allocation3], 1
    %s336 = scalar_lea.sflag [#allocation3], 1
    %337 = vsyncpa %s336, 1
    %338 = vsyncpa [#allocation5], 1
    %s339 = scalar_lea.sflag [#allocation5], 1
    %340 = vsyncpa %s339, 1

</llo_original>
